<compile_context>
chip_gen: v7x
topology: tpu7x:2x2x1
jax: 0.10.0
libtpu: 0.0.40
codegen_flags: <defaults>
</compile_context>

<pallas_src>
import jax
import jax.numpy as jnp
from jax.experimental import pallas as pl
from jax.experimental.pallas import tpu as pltpu


def _vmem_capacity_bytes():
    """Per-TensorCore VMEM capacity, with a conservative (v7x) fallback."""
    try:
        info = pltpu.get_tpu_info()
        cap = getattr(info, "vmem_capacity_bytes", None)
        if cap:
            return int(cap)
    except Exception:
        pass
    return 64 * 1024 * 1024


def _make_ce_kernel(n, tn, c, chunk, ragged):
    """Build the kernel for static (n, tn, c, chunk, ragged)."""
    # Static class-axis chunk schedule (fully unrolled at trace time).
    offs, sizes, off = [], [], 0
    while off < c:
        sz = min(chunk, c - off)
        offs.append(off)
        sizes.append(sz)
        off += sz

    def kernel(x_ref, side_ref, out_ref):
        i = pl.program_id(0)

        # Packed side info: lane 0 = target class index (stored exactly as f32,
        # exact for class ids < 2^24), lane 1 = target-class weight.
        tgt = side_ref[:, 0:1].astype(jnp.int32)   # (tn, 1)
        w_t = side_ref[:, 1:2]                     # (tn, 1) f32

        if ragged:
            rows = i * tn + jax.lax.broadcasted_iota(jnp.int32, (tn, 1), 0)
            valid = rows < n                       # mask garbage tail rows
        else:
            valid = None

        def load_chunk(o, s):
            xc = x_ref[:, o:o + s].astype(jnp.float32)   # cast per chunk only
            if ragged:
                xc = jnp.where(valid, xc, 0.0)           # sanitize before max/exp
            return xc

        # ---- pass 1: per-row max over the class axis (chunked) ----------------
        m = None
        for o, s in zip(offs, sizes):
            cm = jnp.max(load_chunk(o, s), axis=1, keepdims=True)
            m = cm if m is None else jnp.maximum(m, cm)

        # ---- pass 2 (fused): exp-sum and target-logit from the same chunk -----
        ssum = jnp.zeros((tn, 1), jnp.float32)
        tsum = jnp.zeros((tn, 1), jnp.float32)
        for o, s in zip(offs, sizes):
            xc = load_chunk(o, s)
            cols = o + jax.lax.broadcasted_iota(jnp.int32, (tn, s), 1)
            ssum = ssum + jnp.sum(jnp.exp(xc - m), axis=1, keepdims=True)
            tsum = tsum + jnp.sum(jnp.where(cols == tgt, xc, 0.0),
                                  axis=1, keepdims=True)

        # per-row  -w_t * logp[target] = w_t * (m + log(sum_exp) - x_target)
        row = w_t * (m + jnp.log(ssum) - tsum)          # (tn, 1); padded rows -> 0
        num = jnp.sum(row, axis=0, keepdims=True)       # (1, 1)
        den = jnp.sum(w_t, axis=0, keepdims=True)       # (1, 1)

        # Lane-dense partial output: lane 0 = num, lane 1 = den, rest 0.
        lane = jax.lax.broadcasted_iota(jnp.int32, (1, 1, 128), 2)
        out_ref[...] = jnp.where(lane == 0, num.reshape(1, 1, 1),
                                 jnp.where(lane == 1, den.reshape(1, 1, 1), 0.0))

    return kernel


def cross_entropy_one_hot(output, target, weight=None):
    """JAX wrapper: builds the tiny packed side array, streams only the logits."""
    n, c = output.shape
    x = output  # keep native dtype on the wire (bf16 stays bf16)

    # ---- target -> int32 class indices --------------------------------------
    if target.ndim == 1:
        tgt_idx = target.astype(jnp.int32)
    else:
        # TODO(synk): soft (non-one-hot) 2-D targets are not supported; argmax
        # assumes a hard one-hot, matching the module only for hard labels.
        tgt_idx = jnp.argmax(target, axis=1).astype(jnp.int32)

    # ---- per-row target-class weight w_t = w[i, t_i] -------------------------
    if weight is None:
        w_row = jnp.ones((n,), jnp.float32)
    elif weight.ndim == 1:
        w_row = weight.astype(jnp.float32)[tgt_idx]
    else:  # already (N, C)
        w_row = jnp.take_along_axis(
            weight.astype(jnp.float32), tgt_idx[:, None], axis=1)[:, 0]

    # ---- tile sizing from a per-generation VMEM budget ------------------------
    itemsize = jnp.dtype(x.dtype).itemsize
    mult = max(8, 32 // max(1, itemsize))          # f32: 8, bf16: 16, int8/fp8: 32
    chunk = c if c <= 512 else 512                 # class-axis chunk (<= 512 lanes)

    vmem_limit = min(_vmem_capacity_bytes() * 3 // 4, 96 * 1024 * 1024)
    budget = vmem_limit // 2                       # headroom for temps / compiler scratch
    per_row = (2 * c * itemsize                    # double-buffered logits block
               + 2 * 128 * 4                       # double-buffered side block (lane-padded)
               + 4 * 4 * chunk)                    # ~4 live f32 chunk temporaries
    tn = budget // per_row
    tn = max(mult, min(8192, (tn // mult) * mult))
    tn = min(tn, pl.cdiv(n, mult) * mult)
    # TODO(synk): for LLM-vocab scale C (>~64K) add a class-axis grid dimension
    # with an online (flash-style) running max / rescaled exp-sum.

    num_tiles = pl.cdiv(n, tn)
    n_side = num_tiles * tn
    ragged = (n_side != n)

    # Packed (N, 2) side array: [target index as f32, target-class weight].
    side = jnp.stack([tgt_idx.astype(jnp.float32), w_row], axis=1)
    if ragged:
        side = jnp.pad(side, ((0, n_side - n), (0, 0)))   # tgt=0, w=0 -> no contribution

    kernel = _make_ce_kernel(n, tn, c, chunk, ragged)

    partials = pl.pallas_call(
        kernel,
        out_shape=jax.ShapeDtypeStruct((num_tiles, 1, 128), jnp.float32),
        grid_spec=pltpu.PrefetchScalarGridSpec(
            num_scalar_prefetch=0,
            grid=(num_tiles,),
            in_specs=[
                pl.BlockSpec((tn, c), lambda i: (i, 0)),   # logits (only big stream)
                pl.BlockSpec((tn, 2), lambda i: (i, 0)),   # packed target/weight columns
            ],
            out_specs=pl.BlockSpec((1, 1, 128), lambda i: (i, 0, 0)),
        ),
        compiler_params=pltpu.CompilerParams(
            dimension_semantics=("parallel",),             # no cross-step carry
            vmem_limit_bytes=vmem_limit,
        ),
        cost_estimate=pl.CostEstimate(
            flops=5 * n * c,
            transcendentals=n * c,
            bytes_accessed=n * c * itemsize + n_side * 8 + num_tiles * 512,
        ),
    )(x, side)

    num = jnp.sum(partials[:, 0, 0])
    den = jnp.sum(partials[:, 0, 1])
    # NOTE: den == 0 (all target-class weights zero) yields NaN/inf, matching
    # the PyTorch module's divide-by-zero behavior.
    return num / den


def _ref_loss(output, target_idx, weight):
    """Pure-JAX reference with the module's semantics (hard one-hot)."""
    logp = jax.nn.log_softmax(output.astype(jnp.float32), axis=1)
    lt = jnp.take_along_axis(logp, target_idx[:, None], axis=1)[:, 0]
    if weight is None:
        return -jnp.mean(lt)
    if weight.ndim == 1:
        wt = weight.astype(jnp.float32)[target_idx]
    else:
        wt = jnp.take_along_axis(
            weight.astype(jnp.float32), target_idx[:, None], axis=1)[:, 0]
    return jnp.sum(-wt * lt) / jnp.sum(wt)


if __name__ == "__main__":
    key = jax.random.PRNGKey(0)
    k1, k2, k3, k4, k5 = jax.random.split(key, 5)

    N, C = 16, 32
    output = jax.random.normal(k1, (N, C), jnp.float32)
    target = jax.random.randint(k2, (N,), 0, C, dtype=jnp.int32)
    weight = jax.random.uniform(k3, (C,), jnp.float32, minval=0.5, maxval=1.5)

    # 1) weighted, class indices
    loss_w = jax.block_until_ready(cross_entropy_one_hot(output, target, weight))
    assert jnp.allclose(loss_w, _ref_loss(output, target, weight),
                        rtol=1e-5, atol=1e-5), ("weighted", loss_w)

    # 2) unweighted (weight=None)
    loss_u = jax.block_until_ready(cross_entropy_one_hot(output, target, None))
    assert jnp.allclose(loss_u, _ref_loss(output, target, None),
                        rtol=1e-5, atol=1e-5), ("unweighted", loss_u)

    # 3) 2-D (hard) one-hot target path
    onehot = jax.nn.one_hot(target, C, dtype=jnp.float32)
    loss_oh = jax.block_until_ready(cross_entropy_one_hot(output, onehot, weight))
    assert jnp.allclose(loss_oh, loss_w, rtol=1e-5, atol=1e-5), ("onehot", loss_oh)

    # 4) ragged batch -> exercises in-kernel tail masking (no logits pad/copy)
    N2 = 13
    out2 = jax.random.normal(k4, (N2, C), jnp.float32)
    tgt2 = jax.random.randint(k2, (N2,), 0, C, dtype=jnp.int32)
    loss_p = jax.block_until_ready(cross_entropy_one_hot(out2, tgt2, weight))
    assert jnp.allclose(loss_p, _ref_loss(out2, tgt2, weight),
                        rtol=1e-5, atol=1e-5), ("ragged", loss_p)

    # 5) bf16 logits streamed natively (softmax math still f32 in-kernel)
    out_bf16 = output.astype(jnp.bfloat16)
    loss_b = jax.block_until_ready(cross_entropy_one_hot(out_bf16, target, weight))
    assert jnp.allclose(loss_b, _ref_loss(out_bf16, target, weight),
                        rtol=1e-4, atol=1e-4), ("bf16", loss_b)

    # 6) class-axis chunking path (C > 512 -> multiple 512-lane chunks + remainder)
    N3, C3 = 8, 1152
    out3 = jax.random.normal(k5, (N3, C3), jnp.float32)
    tgt3 = jax.random.randint(k2, (N3,), 0, C3, dtype=jnp.int32)
    loss_c = jax.block_until_ready(cross_entropy_one_hot(out3, tgt3, None))
    assert jnp.allclose(loss_c, _ref_loss(out3, tgt3, None),
                        rtol=1e-4, atol=1e-5), ("chunked", loss_c)

    print("KERNEL_OK")
</pallas_src>

<mosaic_0001>
module attributes {stable_mosaic.version = 11 : i64} {
  func.func @kernel(%arg0: i32, %arg1: memref<16x32xf32, #tpu.memory_space<vmem>>, %arg2: memref<16x2xf32, #tpu.memory_space<vmem>>, %arg3: memref<1x1x128xf32, #tpu.memory_space<vmem>>) attributes {dimension_semantics = [#tpu.dimension_semantics<parallel>], iteration_bounds = array<i64: 1>, scalar_prefetch = 0 : i64, scratch_operands = 0 : i64, tpu.core_type = #tpu.core_type<tc>, window_params = [{transform_indices = @transform_0, window_bounds = array<i64: 16, 32>}, {transform_indices = @transform_1, window_bounds = array<i64: 16, 2>}, {transform_indices = @transform_2, window_bounds = array<i64: 1, 1, 128>}]} {
    %c0 = arith.constant 0 : index
    %c0_0 = arith.constant 0 : index
    %0 = vector.load %arg2[%c0, %c0_0] : memref<16x2xf32, #tpu.memory_space<vmem>>, vector<16x1xf32>
    %1 = arith.fptosi %0 : vector<16x1xf32> to vector<16x1xi32>
    %c0_1 = arith.constant 0 : index
    %c1 = arith.constant 1 : index
    %2 = vector.load %arg2[%c0_1, %c1] : memref<16x2xf32, #tpu.memory_space<vmem>>, vector<16x1xf32>
    %c0_2 = arith.constant 0 : index
    %c0_3 = arith.constant 0 : index
    %3 = vector.load %arg1[%c0_2, %c0_3] : memref<16x32xf32, #tpu.memory_space<vmem>>, vector<16x32xf32>
    %cst = arith.constant dense<0xFF800000> : vector<16xf32>
    %4 = vector.multi_reduction <maximumf>, %3, %cst [1] : vector<16x32xf32> to vector<16xf32>
    %5 = vector.shape_cast %4 : vector<16xf32> to vector<16x1xf32>
    %cst_4 = arith.constant 0.000000e+00 : f32
    %6 = vector.broadcast %cst_4 : f32 to vector<16x1xf32>
    %cst_5 = arith.constant 0.000000e+00 : f32
    %7 = vector.broadcast %cst_5 : f32 to vector<16x1xf32>
    %c0_6 = arith.constant 0 : index
    %c0_7 = arith.constant 0 : index
    %8 = vector.load %arg1[%c0_6, %c0_7] : memref<16x32xf32, #tpu.memory_space<vmem>>, vector<16x32xf32>
    %9 = tpu.iota {dimensions = array<i32: 1>} : vector<16x32xi32>
    %c0_i32 = arith.constant 0 : i32
    %10 = vector.broadcast %c0_i32 : i32 to vector<16x32xi32>
    %11 = arith.addi %10, %9 : vector<16x32xi32>
    %12 = vector.broadcast %5 : vector<16x1xf32> to vector<16x32xf32>
    %13 = arith.subf %8, %12 : vector<16x32xf32>
    %14 = math.exp %13 : vector<16x32xf32>
    %cst_8 = arith.constant dense<0.000000e+00> : vector<16xf32>
    %15 = vector.multi_reduction <add>, %14, %cst_8 [1] : vector<16x32xf32> to vector<16xf32>
    %16 = vector.shape_cast %15 : vector<16xf32> to vector<16x1xf32>
    %17 = arith.addf %6, %16 : vector<16x1xf32>
    %18 = vector.broadcast %1 : vector<16x1xi32> to vector<16x32xi32>
    %19 = arith.cmpi eq, %11, %18 : vector<16x32xi32>
    %cst_9 = arith.constant 0.000000e+00 : f32
    %20 = vector.broadcast %cst_9 : f32 to vector<16x32xf32>
    %21 = arith.select %19, %8, %20 : vector<16x32xi1>, vector<16x32xf32>
    %cst_10 = arith.constant dense<0.000000e+00> : vector<16xf32>
    %22 = vector.multi_reduction <add>, %21, %cst_10 [1] : vector<16x32xf32> to vector<16xf32>
    %23 = vector.shape_cast %22 : vector<16xf32> to vector<16x1xf32>
    %24 = arith.addf %7, %23 : vector<16x1xf32>
    %25 = math.log %17 : vector<16x1xf32>
    %26 = arith.addf %5, %25 : vector<16x1xf32>
    %27 = arith.subf %26, %24 : vector<16x1xf32>
    %28 = arith.mulf %2, %27 : vector<16x1xf32>
    %cst_11 = arith.constant dense<0.000000e+00> : vector<1xf32>
    %29 = vector.multi_reduction <add>, %28, %cst_11 [0] : vector<16x1xf32> to vector<1xf32>
    %30 = vector.shape_cast %29 : vector<1xf32> to vector<1x1xf32>
    %cst_12 = arith.constant dense<0.000000e+00> : vector<1xf32>
    %31 = vector.multi_reduction <add>, %2, %cst_12 [0] : vector<16x1xf32> to vector<1xf32>
    %32 = vector.shape_cast %31 : vector<1xf32> to vector<1x1xf32>
    %33 = tpu.iota {dimensions = array<i32: 2>} : vector<1x1x128xi32>
    %c0_i32_13 = arith.constant 0 : i32
    %34 = vector.broadcast %c0_i32_13 : i32 to vector<1x1x128xi32>
    %35 = arith.cmpi eq, %33, %34 : vector<1x1x128xi32>
    %36 = vector.shape_cast %30 : vector<1x1xf32> to vector<1x1x1xf32>
    %c1_i32 = arith.constant 1 : i32
    %37 = vector.broadcast %c1_i32 : i32 to vector<1x1x128xi32>
    %38 = arith.cmpi eq, %33, %37 : vector<1x1x128xi32>
    %39 = vector.shape_cast %32 : vector<1x1xf32> to vector<1x1x1xf32>
    %cst_14 = arith.constant 0.000000e+00 : f32
    %40 = vector.shape_cast %39 : vector<1x1x1xf32> to vector<1x1x1xf32>
    %41 = vector.broadcast %40 : vector<1x1x1xf32> to vector<1x1x128xf32>
    %42 = vector.broadcast %cst_14 : f32 to vector<1x1x128xf32>
    %43 = arith.select %38, %41, %42 : vector<1x1x128xi1>, vector<1x1x128xf32>
    %44 = vector.shape_cast %36 : vector<1x1x1xf32> to vector<1x1x1xf32>
    %45 = vector.broadcast %44 : vector<1x1x1xf32> to vector<1x1x128xf32>
    %46 = arith.select %35, %45, %43 : vector<1x1x128xi1>, vector<1x1x128xf32>
    %c0_15 = arith.constant 0 : index
    %c0_16 = arith.constant 0 : index
    %c0_17 = arith.constant 0 : index
    %47 = vector.load %arg3[%c0_15, %c0_16, %c0_17] : memref<1x1x128xf32, #tpu.memory_space<vmem>>, vector<1x1x128xf32>
    tpu.vector_store %arg3[%c0_15, %c0_16, %c0_17], %46 {strides = array<i32>} : memref<1x1x128xf32, #tpu.memory_space<vmem>>, vector<1x1x128xf32>,
    return
  }
  func.func @transform_0(%arg0: i32) -> (i32, i32) {
    %c0_i32 = arith.constant 0 : i32
    %c0_i32_0 = arith.constant 0 : i32
    return %arg0, %c0_i32 : i32, i32
  }
  func.func @transform_1(%arg0: i32) -> (i32, i32) {
    %c0_i32 = arith.constant 0 : i32
    %c0_i32_0 = arith.constant 0 : i32
    return %arg0, %c0_i32 : i32, i32
  }
  func.func @transform_2(%arg0: i32) -> (i32, i32, i32) {
    %c0_i32 = arith.constant 0 : i32
    %c0_i32_0 = arith.constant 0 : i32
    %c0_i32_1 = arith.constant 0 : i32
    return %arg0, %c0_i32, %c0_i32_0 : i32, i32, i32
  }
}

</mosaic_0001>

<llo_original>
// kernel: tpu_custom_call.1
$region0: #{tpu_custom_call.1}
  #allocation0 [shape = 'u32[]', space=smem, size = 0x4, offset = 0x4, fixed_abs, tag = 'smem constant byte address 0x4 - core index']
  #allocation1 [shape = 'u32[144,128]{1,0:T(1,128)}', space=vmem, size = 0x12000, scoped, tag = 'internal scratch']
  %s0 = inlined_call_operand.vmem [shape: f32[16,32], index: 0, kind: input, shape index: {}]
  %s1 = inlined_call_operand.vmem [shape: f32[16,2], index: 1, kind: input, shape index: {}]
  %s2 = inlined_call_operand.hbm [shape: f32[1,1,128], index: 2, kind: output, shape index: {}]
  %s3 = sld [smem:[#allocation0]]
  $region18: #{tpu_custom_call.1} parent=0
    _
  %s5 = ssub.s32 1, %s3
  %s6 = scalar_select 0, %s5, %s3
  $region1: #{tpu_custom_call.1} parent=0
    #allocation2 [shape = 'u8[512]{0}', space=vmem, size = 0x400, scoped, tag = 'output window, operand 0, single buffered']
    #allocation3 [shape = 's32[1]{0}', space=sflag, size = 0x4, scoped, tag = 'scoped memory for tpu_custom_call.1']
    %7 = vsyncpa [#allocation3], 0
    // Predicated region
    $region2: #{tpu_custom_call.1} parent=1 // pred_check
      _
    $region3: #{tpu_custom_call.1} parent=1 // pred_check_branch
      %9 = sbr.rel (0) target = $region5
    $region4: #{tpu_custom_call.1} parent=1 // pred_region
      _
    $region5: #{tpu_custom_call.1} parent=1 // pred_fallthru
      _
    // Predicated region
    $region6: #{tpu_custom_call.1} parent=1 // pred_check
      _
    $region7: #{tpu_custom_call.1} parent=1 // pred_check_branch
      %11 = sbr.rel (0) target = $region9
    $region8: #{tpu_custom_call.1} parent=1 // pred_region
      _
    $region9: #{tpu_custom_call.1} parent=1 // pred_fallthru
      _
    %v12 = vld [vmem:[%s1] sm:$0xff]
    %v13 = vld [vmem:[%s1 + $0x8] sm:$0xff]
    %v14 = vcvt.f32.s32.to.zero.pseudo %v12
    %v15 = vcvt.f32.s32.to.zero.pseudo %v13
    %v16 = vld [vmem:[%s0] sm:$0xff]
    %v17 = vld [vmem:[%s0 + $0x8] sm:$0xff]
    %vm18 = vcmask 261120
    %v19 = vsel %vm18, %v16, -inf
    %20 = vmax.xlane.f32.xlu0 %v19
    %v21 = vpop.xlane.xlu0 %20
    %v22 = vsel %vm18, %v17, -inf
    %23 = vmax.xlane.f32.xlu0 %v22
    %v24 = vpop.xlane.xlu0 %23
    %v25 = vlaneseq
    %v26 = vand.u32 %v25, 127
    %v27 = vsub.f32 %v16, %v21
    %v28 = vsub.f32 %v17, %v24
    %v29 = vmul.f32 %v27, 1.442695
    %v30 = vpow.pop %v29
    %v31 = vmul.f32 %v28, 1.442695
    %v32 = vpow.pop %v31
    %v33 = vsel %vm18, %v30, 0.0
    %34 = vadd.xlane.f32.xlu0 %v33
    %v35 = vpop.xlane.xlu0 %34
    %v36 = vsel %vm18, %v32, 0.0
    %37 = vadd.xlane.f32.xlu0 %v36
    %v38 = vpop.xlane.xlu0 %37
    %v39 = vadd.f32 %v35, 0.0
    %v40 = vadd.f32 %v38, 0.0
    %41 = vset.pattern.permute.xlu0 0
    %42 = vperm.xlu0 %41, %v14
    %v43 = vpop.permute.xlu0 %42
    %44 = vset.pattern.permute.xlu0 0
    %45 = vperm.xlu0 %44, %v15
    %v46 = vpop.permute.xlu0 %45
    %vm47 = vcmp.eq.s32.totalorder %v26, %v43
    %vm48 = vcmp.eq.s32.totalorder %v26, %v46
    %v49 = vsel %vm47, %v16, 0.0
    %v50 = vsel %vm48, %v17, 0.0
    %v51 = vsel %vm18, %v49, 0.0
    %52 = vadd.xlane.f32.xlu0 %v51
    %v53 = vpop.xlane.xlu0 %52
    %v54 = vsel %vm18, %v50, 0.0
    %55 = vadd.xlane.f32.xlu0 %v54
    %v56 = vpop.xlane.xlu0 %55
    %v57 = vadd.f32 %v53, 0.0
    %v58 = vadd.f32 %v56, 0.0
    %v59 = vlog2.pop %v39
    %v60 = vmul.f32 %v59, 0.6931472
    %v61 = vlog2.pop %v40
    %v62 = vmul.f32 %v61, 0.6931472
    %v63 = vadd.f32 %v21, %v60
    %v64 = vadd.f32 %v24, %v62
    %v65 = vsub.f32 %v63, %v57
    %v66 = vsub.f32 %v64, %v58
    %v67 = vmul.f32 %v12, %v65
    %v68 = vmul.f32 %v13, %v66
    %vm69 = vcmask 15368
    %v70 = vsel %vm69, %v67, 0.0
    %v71 = vsel %vm69, %v68, 0.0
    %v72 = vadd.f32 %v70, %v71
    %v73 = vrot.slane %v72, 4
    %v74 = vadd.f32 %v72, %v73
    %v75 = vrot.slane %v74, 2
    %v76 = vadd.f32 %v74, %v75
    %v77 = vrot.slane %v76, 1
    %v78 = vadd.f32 %v76, %v77
    %v79 = vsel %vm69, %v12, 0.0
    %v80 = vsel %vm69, %v13, 0.0
    %v81 = vadd.f32 %v79, %v80
    %v82 = vrot.slane %v81, 4
    %v83 = vadd.f32 %v81, %v82
    %v84 = vrot.slane %v83, 2
    %v85 = vadd.f32 %v83, %v84
    %v86 = vrot.slane %v85, 1
    %v87 = vadd.f32 %v85, %v86
    %vm88 = vcmp.eq.s32.totalorder %v26, 0
    %vm89 = vcmp.eq.s32.totalorder %v26, 1
    %91 = vset.pattern.permute.xlu0 1
    %92 = vperm.xlu0 %91, %v87
    %v93 = vpop.permute.xlu0 %92
    %v95 = vsel %vm89, %v93, 0.0
    %97 = vset.pattern.permute.xlu0 1
    %98 = vperm.xlu0 %97, %v78
    %v99 = vpop.permute.xlu0 %98
    %v101 = vsel %vm88, %v99, %v95
    %102 = vst [vmem:[#allocation2] sm:$0x1] %v101
    // Predicated region
    $region10: #{tpu_custom_call.1} parent=1 // pred_check
      _
    $region11: #{tpu_custom_call.1} parent=1 // pred_check_branch
      %104 = sbr.rel (0) target = $region13
    $region12: #{tpu_custom_call.1} parent=1 // pred_region
      %s106 = ssub.s32 16, 16
      %107 = vsyncadd [#allocation3], %s106
      %s109 = sshll.u32 [#allocation2], 4
      %s110 = int_to_ptr.vmem [resolvable:$true] %s109
      %112 = dma.vmem_to_hbm [thread:$0]  %s110, 16, %s2, [#allocation3]
    $region13: #{tpu_custom_call.1} parent=1 // pred_fallthru
      _
    // Predicated region
    $region14: #{tpu_custom_call.1} parent=1 // pred_check
      _
    $region15: #{tpu_custom_call.1} parent=1 // pred_check_branch
      %114 = sbr.rel (0) target = $region17
    $region16: #{tpu_custom_call.1} parent=1 // pred_region
      %115 = dma.done [#allocation3], 16
    $region17: #{tpu_custom_call.1} parent=1 // pred_fallthru
      _
    %116 = vsyncpa [#allocation3], 1

</llo_original>
